<compile_context>
chip_gen: v6e
topology: v6e:2x2x1
jax: 0.10.0
libtpu: 0.0.40
codegen_flags: <defaults>
</compile_context>

<pallas_src>
import jax
import jax.numpy as jnp
from jax.experimental import pallas as pl
from jax.experimental.pallas import tpu as pltpu


def _pos_emb_kernel(x_emb_ref, y_emb_ref, o_ref, slab_ref):
    # x_emb_ref: (tx, D)   y_emb_ref: (Y, D)
    # o_ref:     (B, tx, Y*D)   slab_ref: (tx, Y*D) VMEM scratch
    b = o_ref.shape[0]
    y, d = y_emb_ref.shape

    xe = x_emb_ref[...]                                    # (tx, D)

    # Build one lane-dense slab: slab[x, yi*D + d] = xe[x, d] + ye[yi, d].
    # Static minor-dim slice stores (masked vst) touch only the slab, which is
    # 1/B of the total output traffic.
    for yi in range(y):
        ye_row = y_emb_ref[yi:yi + 1, :]                   # (1, D)
        slab_ref[:, yi * d:(yi + 1) * d] = xe + ye_row     # (tx, D)

    # Output is independent of batch: copy the slab into every batch row of
    # this X tile with full-lane dense stores (and a dense write-back DMA).
    for bi in range(b):
        o_ref[bi, :, :] = slab_ref[...]


def _pick_x_tile(x_extent, bytes_per_x_row, budget_bytes):
    """Pick the X tile size.

    Candidates are multiples of 8 that divide X (plus the full extent X, which
    is always a legal block dim). Choose the largest tile whose VMEM footprint
    (double-buffered output block + slab scratch) fits `budget_bytes`; among
    those, prefer one giving >= 2 grid steps so megacore has work to split.
    """
    cands = {x_extent}
    if x_extent % 8 == 0:
        cands.update(t for t in range(8, x_extent + 1, 8) if x_extent % t == 0)
    cands = sorted(cands)
    fitting = [t for t in cands if t * bytes_per_x_row <= budget_bytes]
    if not fitting:
        fitting = [cands[0]]
    multi = [t for t in fitting if x_extent // t >= 2]
    return max(multi) if multi else max(fitting)


def positional_embedding_2d(inputs, x_table, y_table):
    """inputs: (B, X, Y, D) (only shape used); x_table: (max_x, D); y_table: (max_y, D)."""
    batch, x, y, dim = inputs.shape
    assert x_table.shape[1] == dim and y_table.shape[1] == dim
    assert x <= x_table.shape[0] and y <= y_table.shape[0]

    out_dtype = jnp.float32

    # Embedding lookup of arange(x)/arange(y) == leading slice of the tables.
    x_emb = x_table[:x].astype(out_dtype)                  # (X, D)
    y_emb = y_table[:y].astype(out_dtype)                  # (Y, D)

    yd = y * dim
    itemsize = jnp.dtype(out_dtype).itemsize
    # Per X row: double-buffered out block (2*B) + slab scratch (1).
    bytes_per_x_row = (2 * batch + 1) * yd * itemsize
    # ~8 MiB keeps us well under v5e's 16 MiB default scoped VMEM and v7x's
    # smaller physical VMEM while staying big enough for roofline.
    tx = _pick_x_tile(x, bytes_per_x_row, budget_bytes=8 << 20)
    grid = (pl.cdiv(x, tx),)                               # exact: tx divides x

    flops = x * y * dim                                    # one add per slab element
    bytes_accessed = (batch * x * y * dim + x * dim + y * dim) * itemsize

    out_flat = pl.pallas_call(
        _pos_emb_kernel,
        out_shape=jax.ShapeDtypeStruct((batch, x, yd), out_dtype),
        grid_spec=pltpu.PrefetchScalarGridSpec(
            num_scalar_prefetch=0,
            grid=grid,
            in_specs=[
                pl.BlockSpec((tx, dim), lambda i: (i, 0)),   # X tile of x_emb
                pl.BlockSpec((y, dim), lambda i: (0, 0)),    # full y_emb (fetched once)
            ],
            out_specs=pl.BlockSpec((batch, tx, yd), lambda i: (0, i, 0)),
            scratch_shapes=[pltpu.VMEM((tx, yd), out_dtype)],
        ),
        compiler_params=pltpu.CompilerParams(
            dimension_semantics=("parallel",),
        ),
        cost_estimate=pl.CostEstimate(
            flops=flops, transcendentals=0, bytes_accessed=bytes_accessed),
    )(x_emb, y_emb)

    # Metadata-only reshape back to the module's (B, X, Y, D) layout.
    return out_flat.reshape(batch, x, y, dim)


def reference(inputs, x_table, y_table):
    batch, x, y, dim = inputs.shape
    x_emb = x_table[:x]                                    # (X, D)
    y_emb = y_table[:y]                                    # (Y, D)
    x_b = jnp.broadcast_to(x_emb[None, :, None, :], (batch, x, y, dim))
    y_b = jnp.broadcast_to(y_emb[None, None, :, :], (batch, x, y, dim))
    return x_b + y_b


if __name__ == "__main__":
    key = jax.random.PRNGKey(0)
    k1, k2, k3 = jax.random.split(key, 3)

    # Module config: nn.Embedding(max_x_pos, dim), nn.Embedding(max_y_pos, dim)
    max_x_pos, max_y_pos, dim = 16, 16, 32
    batch, x, y = 2, 16, 16

    # Deterministic parameter init (nn.Embedding default ~ N(0, 1)).
    x_table = jax.random.normal(k1, (max_x_pos, dim), dtype=jnp.float32)
    y_table = jax.random.normal(k2, (max_y_pos, dim), dtype=jnp.float32)

    # inputs: only the shape matters to the module's forward.
    inputs = jax.random.normal(k3, (batch, x, y, dim), dtype=jnp.float32)

    out = positional_embedding_2d(inputs, x_table, y_table)
    out = jax.block_until_ready(out)

    ref = reference(inputs, x_table, y_table)
    assert out.shape == (batch, x, y, dim)
    assert out.dtype == jnp.float32
    assert jnp.allclose(out, ref, atol=1e-6, rtol=1e-6)

    print("KERNEL_OK")
</pallas_src>

<mosaic_0001>
module attributes {stable_mosaic.version = 11 : i64} {
  func.func @_pos_emb_kernel(%arg0: i32, %arg1: memref<8x32xf32, #tpu.memory_space<vmem>>, %arg2: memref<16x32xf32, #tpu.memory_space<vmem>>, %arg3: memref<2x8x512xf32, #tpu.memory_space<vmem>>, %arg4: memref<8x512xf32, #tpu.memory_space<vmem>>) attributes {dimension_semantics = [#tpu.dimension_semantics<parallel>], iteration_bounds = array<i64: 2>, scalar_prefetch = 0 : i64, scratch_operands = 1 : i64, tpu.core_type = #tpu.core_type<tc>, window_params = [{transform_indices = @transform_0, window_bounds = array<i64: 8, 32>}, {pipeline_mode = #tpu.pipeline_mode<synchronous>, transform_indices = @transform_1, window_bounds = array<i64: 16, 32>}, {transform_indices = @transform_2, window_bounds = array<i64: 2, 8, 512>}]} {
    %c0 = arith.constant 0 : index
    %c0_0 = arith.constant 0 : index
    %0 = vector.load %arg1[%c0, %c0_0] : memref<8x32xf32, #tpu.memory_space<vmem>>, vector<8x32xf32>
    %c0_1 = arith.constant 0 : index
    %c0_2 = arith.constant 0 : index
    %1 = vector.load %arg2[%c0_1, %c0_2] : memref<16x32xf32, #tpu.memory_space<vmem>>, vector<1x32xf32>
    %2 = vector.broadcast %1 : vector<1x32xf32> to vector<8x32xf32>
    %3 = arith.addf %0, %2 : vector<8x32xf32>
    %c0_3 = arith.constant 0 : index
    %c0_4 = arith.constant 0 : index
    %4 = vector.load %arg4[%c0_3, %c0_4] : memref<8x512xf32, #tpu.memory_space<vmem>>, vector<8x32xf32>
    tpu.vector_store %arg4[%c0_3, %c0_4], %3 {strides = array<i32>} : memref<8x512xf32, #tpu.memory_space<vmem>>, vector<8x32xf32>,
    %c1 = arith.constant 1 : index
    %c0_5 = arith.constant 0 : index
    %5 = vector.load %arg2[%c1, %c0_5] : memref<16x32xf32, #tpu.memory_space<vmem>>, vector<1x32xf32>
    %6 = vector.broadcast %5 : vector<1x32xf32> to vector<8x32xf32>
    %7 = arith.addf %0, %6 : vector<8x32xf32>
    %c0_6 = arith.constant 0 : index
    %c32 = arith.constant 32 : index
    %8 = vector.load %arg4[%c0_6, %c32] : memref<8x512xf32, #tpu.memory_space<vmem>>, vector<8x32xf32>
    tpu.vector_store %arg4[%c0_6, %c32], %7 {strides = array<i32>} : memref<8x512xf32, #tpu.memory_space<vmem>>, vector<8x32xf32>,
    %c2 = arith.constant 2 : index
    %c0_7 = arith.constant 0 : index
    %9 = vector.load %arg2[%c2, %c0_7] : memref<16x32xf32, #tpu.memory_space<vmem>>, vector<1x32xf32>
    %10 = vector.broadcast %9 : vector<1x32xf32> to vector<8x32xf32>
    %11 = arith.addf %0, %10 : vector<8x32xf32>
    %c0_8 = arith.constant 0 : index
    %c64 = arith.constant 64 : index
    %12 = vector.load %arg4[%c0_8, %c64] : memref<8x512xf32, #tpu.memory_space<vmem>>, vector<8x32xf32>
    tpu.vector_store %arg4[%c0_8, %c64], %11 {strides = array<i32>} : memref<8x512xf32, #tpu.memory_space<vmem>>, vector<8x32xf32>,
    %c3 = arith.constant 3 : index
    %c0_9 = arith.constant 0 : index
    %13 = vector.load %arg2[%c3, %c0_9] : memref<16x32xf32, #tpu.memory_space<vmem>>, vector<1x32xf32>
    %14 = vector.broadcast %13 : vector<1x32xf32> to vector<8x32xf32>
    %15 = arith.addf %0, %14 : vector<8x32xf32>
    %c0_10 = arith.constant 0 : index
    %c96 = arith.constant 96 : index
    %16 = vector.load %arg4[%c0_10, %c96] : memref<8x512xf32, #tpu.memory_space<vmem>>, vector<8x32xf32>
    tpu.vector_store %arg4[%c0_10, %c96], %15 {strides = array<i32>} : memref<8x512xf32, #tpu.memory_space<vmem>>, vector<8x32xf32>,
    %c4 = arith.constant 4 : index
    %c0_11 = arith.constant 0 : index
    %17 = vector.load %arg2[%c4, %c0_11] : memref<16x32xf32, #tpu.memory_space<vmem>>, vector<1x32xf32>
    %18 = vector.broadcast %17 : vector<1x32xf32> to vector<8x32xf32>
    %19 = arith.addf %0, %18 : vector<8x32xf32>
    %c0_12 = arith.constant 0 : index
    %c128 = arith.constant 128 : index
    %20 = vector.load %arg4[%c0_12, %c128] : memref<8x512xf32, #tpu.memory_space<vmem>>, vector<8x32xf32>
    tpu.vector_store %arg4[%c0_12, %c128], %19 {strides = array<i32>} : memref<8x512xf32, #tpu.memory_space<vmem>>, vector<8x32xf32>,
    %c5 = arith.constant 5 : index
    %c0_13 = arith.constant 0 : index
    %21 = vector.load %arg2[%c5, %c0_13] : memref<16x32xf32, #tpu.memory_space<vmem>>, vector<1x32xf32>
    %22 = vector.broadcast %21 : vector<1x32xf32> to vector<8x32xf32>
    %23 = arith.addf %0, %22 : vector<8x32xf32>
    %c0_14 = arith.constant 0 : index
    %c160 = arith.constant 160 : index
    %24 = vector.load %arg4[%c0_14, %c160] : memref<8x512xf32, #tpu.memory_space<vmem>>, vector<8x32xf32>
    tpu.vector_store %arg4[%c0_14, %c160], %23 {strides = array<i32>} : memref<8x512xf32, #tpu.memory_space<vmem>>, vector<8x32xf32>,
    %c6 = arith.constant 6 : index
    %c0_15 = arith.constant 0 : index
    %25 = vector.load %arg2[%c6, %c0_15] : memref<16x32xf32, #tpu.memory_space<vmem>>, vector<1x32xf32>
    %26 = vector.broadcast %25 : vector<1x32xf32> to vector<8x32xf32>
    %27 = arith.addf %0, %26 : vector<8x32xf32>
    %c0_16 = arith.constant 0 : index
    %c192 = arith.constant 192 : index
    %28 = vector.load %arg4[%c0_16, %c192] : memref<8x512xf32, #tpu.memory_space<vmem>>, vector<8x32xf32>
    tpu.vector_store %arg4[%c0_16, %c192], %27 {strides = array<i32>} : memref<8x512xf32, #tpu.memory_space<vmem>>, vector<8x32xf32>,
    %c7 = arith.constant 7 : index
    %c0_17 = arith.constant 0 : index
    %29 = vector.load %arg2[%c7, %c0_17] : memref<16x32xf32, #tpu.memory_space<vmem>>, vector<1x32xf32>
    %30 = vector.broadcast %29 : vector<1x32xf32> to vector<8x32xf32>
    %31 = arith.addf %0, %30 : vector<8x32xf32>
    %c0_18 = arith.constant 0 : index
    %c224 = arith.constant 224 : index
    %32 = vector.load %arg4[%c0_18, %c224] : memref<8x512xf32, #tpu.memory_space<vmem>>, vector<8x32xf32>
    tpu.vector_store %arg4[%c0_18, %c224], %31 {strides = array<i32>} : memref<8x512xf32, #tpu.memory_space<vmem>>, vector<8x32xf32>,
    %c8 = arith.constant 8 : index
    %c0_19 = arith.constant 0 : index
    %33 = vector.load %arg2[%c8, %c0_19] : memref<16x32xf32, #tpu.memory_space<vmem>>, vector<1x32xf32>
    %34 = vector.broadcast %33 : vector<1x32xf32> to vector<8x32xf32>
    %35 = arith.addf %0, %34 : vector<8x32xf32>
    %c0_20 = arith.constant 0 : index
    %c256 = arith.constant 256 : index
    %36 = vector.load %arg4[%c0_20, %c256] : memref<8x512xf32, #tpu.memory_space<vmem>>, vector<8x32xf32>
    tpu.vector_store %arg4[%c0_20, %c256], %35 {strides = array<i32>} : memref<8x512xf32, #tpu.memory_space<vmem>>, vector<8x32xf32>,
    %c9 = arith.constant 9 : index
    %c0_21 = arith.constant 0 : index
    %37 = vector.load %arg2[%c9, %c0_21] : memref<16x32xf32, #tpu.memory_space<vmem>>, vector<1x32xf32>
    %38 = vector.broadcast %37 : vector<1x32xf32> to vector<8x32xf32>
    %39 = arith.addf %0, %38 : vector<8x32xf32>
    %c0_22 = arith.constant 0 : index
    %c288 = arith.constant 288 : index
    %40 = vector.load %arg4[%c0_22, %c288] : memref<8x512xf32, #tpu.memory_space<vmem>>, vector<8x32xf32>
    tpu.vector_store %arg4[%c0_22, %c288], %39 {strides = array<i32>} : memref<8x512xf32, #tpu.memory_space<vmem>>, vector<8x32xf32>,
    %c10 = arith.constant 10 : index
    %c0_23 = arith.constant 0 : index
    %41 = vector.load %arg2[%c10, %c0_23] : memref<16x32xf32, #tpu.memory_space<vmem>>, vector<1x32xf32>
    %42 = vector.broadcast %41 : vector<1x32xf32> to vector<8x32xf32>
    %43 = arith.addf %0, %42 : vector<8x32xf32>
    %c0_24 = arith.constant 0 : index
    %c320 = arith.constant 320 : index
    %44 = vector.load %arg4[%c0_24, %c320] : memref<8x512xf32, #tpu.memory_space<vmem>>, vector<8x32xf32>
    tpu.vector_store %arg4[%c0_24, %c320], %43 {strides = array<i32>} : memref<8x512xf32, #tpu.memory_space<vmem>>, vector<8x32xf32>,
    %c11 = arith.constant 11 : index
    %c0_25 = arith.constant 0 : index
    %45 = vector.load %arg2[%c11, %c0_25] : memref<16x32xf32, #tpu.memory_space<vmem>>, vector<1x32xf32>
    %46 = vector.broadcast %45 : vector<1x32xf32> to vector<8x32xf32>
    %47 = arith.addf %0, %46 : vector<8x32xf32>
    %c0_26 = arith.constant 0 : index
    %c352 = arith.constant 352 : index
    %48 = vector.load %arg4[%c0_26, %c352] : memref<8x512xf32, #tpu.memory_space<vmem>>, vector<8x32xf32>
    tpu.vector_store %arg4[%c0_26, %c352], %47 {strides = array<i32>} : memref<8x512xf32, #tpu.memory_space<vmem>>, vector<8x32xf32>,
    %c12 = arith.constant 12 : index
    %c0_27 = arith.constant 0 : index
    %49 = vector.load %arg2[%c12, %c0_27] : memref<16x32xf32, #tpu.memory_space<vmem>>, vector<1x32xf32>
    %50 = vector.broadcast %49 : vector<1x32xf32> to vector<8x32xf32>
    %51 = arith.addf %0, %50 : vector<8x32xf32>
    %c0_28 = arith.constant 0 : index
    %c384 = arith.constant 384 : index
    %52 = vector.load %arg4[%c0_28, %c384] : memref<8x512xf32, #tpu.memory_space<vmem>>, vector<8x32xf32>
    tpu.vector_store %arg4[%c0_28, %c384], %51 {strides = array<i32>} : memref<8x512xf32, #tpu.memory_space<vmem>>, vector<8x32xf32>,
    %c13 = arith.constant 13 : index
    %c0_29 = arith.constant 0 : index
    %53 = vector.load %arg2[%c13, %c0_29] : memref<16x32xf32, #tpu.memory_space<vmem>>, vector<1x32xf32>
    %54 = vector.broadcast %53 : vector<1x32xf32> to vector<8x32xf32>
    %55 = arith.addf %0, %54 : vector<8x32xf32>
    %c0_30 = arith.constant 0 : index
    %c416 = arith.constant 416 : index
    %56 = vector.load %arg4[%c0_30, %c416] : memref<8x512xf32, #tpu.memory_space<vmem>>, vector<8x32xf32>
    tpu.vector_store %arg4[%c0_30, %c416], %55 {strides = array<i32>} : memref<8x512xf32, #tpu.memory_space<vmem>>, vector<8x32xf32>,
    %c14 = arith.constant 14 : index
    %c0_31 = arith.constant 0 : index
    %57 = vector.load %arg2[%c14, %c0_31] : memref<16x32xf32, #tpu.memory_space<vmem>>, vector<1x32xf32>
    %58 = vector.broadcast %57 : vector<1x32xf32> to vector<8x32xf32>
    %59 = arith.addf %0, %58 : vector<8x32xf32>
    %c0_32 = arith.constant 0 : index
    %c448 = arith.constant 448 : index
    %60 = vector.load %arg4[%c0_32, %c448] : memref<8x512xf32, #tpu.memory_space<vmem>>, vector<8x32xf32>
    tpu.vector_store %arg4[%c0_32, %c448], %59 {strides = array<i32>} : memref<8x512xf32, #tpu.memory_space<vmem>>, vector<8x32xf32>,
    %c15 = arith.constant 15 : index
    %c0_33 = arith.constant 0 : index
    %61 = vector.load %arg2[%c15, %c0_33] : memref<16x32xf32, #tpu.memory_space<vmem>>, vector<1x32xf32>
    %62 = vector.broadcast %61 : vector<1x32xf32> to vector<8x32xf32>
    %63 = arith.addf %0, %62 : vector<8x32xf32>
    %c0_34 = arith.constant 0 : index
    %c480 = arith.constant 480 : index
    %64 = vector.load %arg4[%c0_34, %c480] : memref<8x512xf32, #tpu.memory_space<vmem>>, vector<8x32xf32>
    tpu.vector_store %arg4[%c0_34, %c480], %63 {strides = array<i32>} : memref<8x512xf32, #tpu.memory_space<vmem>>, vector<8x32xf32>,
    %c0_35 = arith.constant 0 : index
    %c0_36 = arith.constant 0 : index
    %65 = vector.load %arg4[%c0_35, %c0_36] : memref<8x512xf32, #tpu.memory_space<vmem>>, vector<8x512xf32>
    %c0_37 = arith.constant 0 : index
    %c0_38 = arith.constant 0 : index
    %c0_39 = arith.constant 0 : index
    %66 = vector.load %arg3[%c0_37, %c0_38, %c0_39] : memref<2x8x512xf32, #tpu.memory_space<vmem>>, vector<1x8x512xf32>
    %67 = vector.shape_cast %66 : vector<1x8x512xf32> to vector<8x512xf32>
    %68 = vector.shape_cast %65 : vector<8x512xf32> to vector<1x8x512xf32>
    tpu.vector_store %arg3[%c0_37, %c0_38, %c0_39], %68 {strides = array<i32>} : memref<2x8x512xf32, #tpu.memory_space<vmem>>, vector<1x8x512xf32>,
    %c0_40 = arith.constant 0 : index
    %c0_41 = arith.constant 0 : index
    %69 = vector.load %arg4[%c0_40, %c0_41] : memref<8x512xf32, #tpu.memory_space<vmem>>, vector<8x512xf32>
    %c1_42 = arith.constant 1 : index
    %c0_43 = arith.constant 0 : index
    %c0_44 = arith.constant 0 : index
    %70 = vector.load %arg3[%c1_42, %c0_43, %c0_44] : memref<2x8x512xf32, #tpu.memory_space<vmem>>, vector<1x8x512xf32>
    %71 = vector.shape_cast %70 : vector<1x8x512xf32> to vector<8x512xf32>
    %72 = vector.shape_cast %69 : vector<8x512xf32> to vector<1x8x512xf32>
    tpu.vector_store %arg3[%c1_42, %c0_43, %c0_44], %72 {strides = array<i32>} : memref<2x8x512xf32, #tpu.memory_space<vmem>>, vector<1x8x512xf32>,
    return
  }
  func.func @transform_0(%arg0: i32) -> (i32, i32) {
    %c0_i32 = arith.constant 0 : i32
    %c0_i32_0 = arith.constant 0 : i32
    return %arg0, %c0_i32 : i32, i32
  }
  func.func @transform_1(%arg0: i32) -> (i32, i32) {
    %c0_i32 = arith.constant 0 : i32
    %c0_i32_0 = arith.constant 0 : i32
    %c0_i32_1 = arith.constant 0 : i32
    return %c0_i32, %c0_i32_0 : i32, i32
  }
  func.func @transform_2(%arg0: i32) -> (i32, i32, i32) {
    %c0_i32 = arith.constant 0 : i32
    %c0_i32_0 = arith.constant 0 : i32
    %c0_i32_1 = arith.constant 0 : i32
    return %c0_i32, %arg0, %c0_i32_0 : i32, i32, i32
  }
}

</mosaic_0001>

<llo_original>
// kernel: tpu_custom_call.1
$region0: #{tpu_custom_call.1}
  #allocation0 [shape = 'u32[]', space=smem, size = 0x4, offset = 0x4, fixed_abs, tag = 'smem constant byte address 0x4 - core index']
  #allocation1 [shape = 'u32[144,128]{1,0:T(1,128)}', space=vmem, size = 0x12000, scoped, tag = 'internal scratch']
  #allocation2 [shape = 'f32[8,512]{1,0:T(8,128)}', space=vmem, size = 0x4000, scoped, tag = 'scratch operand']
  %s0 = inlined_call_operand.hbm [shape: f32[16,32], index: 0, kind: input, shape index: {}]
  %s1 = inlined_call_operand.hbm [shape: f32[16,32], index: 1, kind: input, shape index: {}]
  %s2 = inlined_call_operand.hbm [shape: f32[2,16,512], index: 2, kind: output, shape index: {}]
  %s3 = sld [smem:[#allocation0]]
  $region49: #{tpu_custom_call.1} parent=0
    _
  %s5 = ssub.s32 1, %s3
  %s6 = scalar_select 0, %s5, %s3
  $region1: #{tpu_custom_call.1} parent=0
    #allocation3 [shape = 'u8[8192]{0}', space=vmem, size = 0x2000, scoped, tag = 'input window, operand 0']
    #allocation4 [shape = 's32[2]{0}', space=sflag, size = 0x8, scoped, tag = 'scoped memory for tpu_custom_call.1']
    #allocation5 [shape = 's32[2]{0}', space=sflag, size = 0x8, scoped, tag = 'scoped memory for tpu_custom_call.1']
    #allocation6 [shape = 'u8[8192]{0}', space=vmem, size = 0x2000, scoped, tag = 'input window, operand 1, single buffered']
    #allocation7 [shape = 's32[1]{0}', space=sflag, size = 0x4, scoped, tag = 'scoped memory for tpu_custom_call.1']
    #allocation8 [shape = 'u8[65536]{0}', space=vmem, size = 0x10000, scoped, tag = 'output window, operand 0']
    %7 = vsyncpa [#allocation4], 0
    %s8 = scalar_lea.sflag [#allocation4], 1
    %9 = vsyncpa %s8, 0
    %10 = vsyncpa [#allocation7], 0
    %11 = vsyncpa [#allocation5], 0
    %s12 = scalar_lea.sflag [#allocation5], 1
    %13 = vsyncpa %s12, 0
    loop: start=0, step=1, limit=4
    $region2: #{tpu_custom_call.1} parent=1 // loop_pre_header
      _
    $region3: #{tpu_custom_call.1} parent=1 // loop_header
      %s15 = sphi 0, %s19
      %p16 = scmp.ge.s32.totalorder %s15, 4
      %s25 = sphi 0, %s27
      %s28 = sphi 0, %s25
      %s29 = sphi 0, %s28
      %s45 = sphi 0, %s29
      %s49 = sphi 0, %s49
      %s51 = sphi 0, %s49
      %s52 = sphi 0, %s51
      %s66 = sphi 0, %s52
      %s72 = sphi 0, %s74
      %s75 = sphi 0, %s72
      %s76 = sphi 0, %s75
      %s92 = sphi 0, %s76
    $region4: #{tpu_custom_call.1} parent=1 // loop_header_branch
      %18 = sbr.rel (%p16) target = $region8
    $region5: #{tpu_custom_call.1} parent=1 // loop_body
      %s20 = ssub.s32 %s15, 1
      %s21 = ssub.s32 %s15, 2
      %s22 = sadd.s32 %s15, 1
      %s23 = ssub.s32 %s15, %s22
      %p24 = scmp.eq.s32.totalorder %s23, 0
      %s26 = sadd.s32 %s25, 1
      %s27 = scalar_select %p24, %s25, %s26
      %p30 = pneg %p24
      %p31 = scmp.eq.s32.totalorder %s15, 1
      %p32 = por %p30, %p31
      %p33 = scmp.ne.s32.totalorder %s25, %s28
      %p34 = scmp.eq.s32.totalorder %s15, 0
      %p35 = por %p33, %p34
      %p36 = scmp.ne.s32.totalorder %s25, %s28
      %p37 = scmp.eq.s32.totalorder %s20, 1
      %p38 = por %p36, %p37
      %p39 = scmp.ne.s32.totalorder %s28, %s29
      %p40 = scmp.eq.s32.totalorder %s20, 0
      %p41 = por %p39, %p40
      %p42 = scmp.ne.s32.totalorder %s28, %s29
      %p43 = scmp.eq.s32.totalorder %s21, 1
      %p44 = por %p42, %p43
      %p46 = scmp.ne.s32.totalorder %s29, %s45
      %p47 = scmp.eq.s32.totalorder %s21, 0
      %p48 = por %p46, %p47
      %s50 = sadd.s32 %s49, 1
      %p53 = scmp.eq.s32.totalorder %s15, 1
      %p54 = scmp.ne.s32.totalorder %s49, %s51
      %p55 = scmp.eq.s32.totalorder %s15, 0
      %p56 = por %p54, %p55
      %p57 = scmp.ne.s32.totalorder %s49, %s51
      %p58 = scmp.eq.s32.totalorder %s20, 1
      %p59 = por %p57, %p58
      %p60 = scmp.ne.s32.totalorder %s51, %s52
      %p61 = scmp.eq.s32.totalorder %s20, 0
      %p62 = por %p60, %p61
      %p63 = scmp.ne.s32.totalorder %s51, %s52
      %p64 = scmp.eq.s32.totalorder %s21, 1
      %p65 = por %p63, %p64
      %p67 = scmp.ne.s32.totalorder %s52, %s66
      %p68 = scmp.eq.s32.totalorder %s21, 0
      %p69 = por %p67, %p68
      %s70 = ssub.s32 %s15, %s22
      %p71 = scmp.eq.s32.totalorder %s70, 0
      %s73 = sadd.s32 %s72, 1
      %s74 = scalar_select %p71, %s72, %s73
      %p77 = pneg %p71
      %p78 = scmp.eq.s32.totalorder %s15, 1
      %p79 = por %p77, %p78
      %p80 = scmp.ne.s32.totalorder %s72, %s75
      %p81 = scmp.eq.s32.totalorder %s15, 0
      %p82 = por %p80, %p81
      %p83 = scmp.ne.s32.totalorder %s72, %s75
      %p84 = scmp.eq.s32.totalorder %s20, 1
      %p85 = por %p83, %p84
      %p86 = scmp.ne.s32.totalorder %s75, %s76
      %p87 = scmp.eq.s32.totalorder %s20, 0
      %p88 = por %p86, %p87
      %p89 = scmp.ne.s32.totalorder %s75, %s76
      %p90 = scmp.eq.s32.totalorder %s21, 1
      %p91 = por %p89, %p90
      %p93 = scmp.ne.s32.totalorder %s76, %s92
      %p94 = scmp.eq.s32.totalorder %s21, 0
      %p95 = por %p93, %p94
      %p96 = scmp.le.s32.totalorder 1, %s15
      %p97 = scmp.lt.s32.totalorder %s15, 3
      %p98 = pnand %p96, %p97
      %p99 = pneg %p98
      // Predicated region
      $region9: #{tpu_custom_call.1} parent=5 // pred_check
        _
      $region10: #{tpu_custom_call.1} parent=5 // pred_check_branch
        %101 = sbr.rel (%p98) target = $region12
      $region11: #{tpu_custom_call.1} parent=5 // pred_region
        %s102 = ssub.s32 %s15, 1
        // Predicated region
        $region13: #{tpu_custom_call.1} parent=11 // pred_check
          %p103 = pneg %p62
        $region14: #{tpu_custom_call.1} parent=11 // pred_check_branch
          %105 = sbr.rel (%p103) target = $region16
        $region15: #{tpu_custom_call.1} parent=11 // pred_region
          %s107 = ssub.s32 256, 256
          %108 = vsyncadd [#allocation7], %s107
          %s109 = sshll.u32 [#allocation6], 4
          %s110 = int_to_ptr.vmem [resolvable:$true] %s109
          %115 = dma.hbm_to_vmem [thread:$0]  %s1, 256, %s110, [#allocation7], 128, 128, 8
        $region16: #{tpu_custom_call.1} parent=11 // pred_fallthru
          _
      $region12: #{tpu_custom_call.1} parent=5 // pred_fallthru
        _
      %p116 = scmp.lt.s32.totalorder %s15, 2
      // Predicated region
      $region17: #{tpu_custom_call.1} parent=5 // pred_check
        %p117 = pneg %p116
      $region18: #{tpu_custom_call.1} parent=5 // pred_check_branch
        %119 = sbr.rel (%p117) target = $region20
      $region19: #{tpu_custom_call.1} parent=5 // pred_region
        // Predicated region
        $region21: #{tpu_custom_call.1} parent=19 // pred_check
          %p120 = pneg %p35
        $region22: #{tpu_custom_call.1} parent=19 // pred_check_branch
          %122 = sbr.rel (%p120) target = $region24
        $region23: #{tpu_custom_call.1} parent=19 // pred_region
          %s123 = sand.u32 %s25, 1
          %s124 = scalar_lea.sflag [#allocation4], %s123
          %s125 = sand.u32 %s25, 1
          %s126 = smul.addr %s125, 8
          %s127 = scalar_lea.vmem [#allocation3], %s126
          %s129 = ssub.s32 128, 128
          %130 = vsyncadd %s124, %s129
          %s131 = smul.addr %s15, 128
          %s132 = scalar_lea.hbm %s0, %s131
          %s134 = sshll.u32 %s127, 4
          %s135 = int_to_ptr.vmem [resolvable:$true] %s134
          %137 = dma.hbm_to_vmem [thread:$0]  %s132, 128, %s135, %s124
        $region24: #{tpu_custom_call.1} parent=19 // pred_fallthru
          _
      $region20: #{tpu_custom_call.1} parent=5 // pred_fallthru
        _
      %p138 = scmp.le.s32.totalorder 1, %s15
      %p139 = scmp.lt.s32.totalorder %s15, 3
      %p140 = pnand %p138, %p139
      %p141 = pneg %p140
      // Predicated region
      $region25: #{tpu_custom_call.1} parent=5 // pred_check
        _
      $region26: #{tpu_custom_call.1} parent=5 // pred_check_branch
        %143 = sbr.rel (%p140) target = $region28
      $region27: #{tpu_custom_call.1} parent=5 // pred_region
        %s144 = ssub.s32 %s15, 1
        %s145 = sand.u32 %s28, 1
        %s146 = scalar_lea.sflag [#allocation4], %s145
        %s147 = sand.u32 %s28, 1
        %s148 = smul.addr %s147, 8
        %s149 = scalar_lea.vmem [#allocation3], %s148
        // Predicated region
        $region29: #{tpu_custom_call.1} parent=27 // pred_check
          %p150 = pneg %p41
        $region30: #{tpu_custom_call.1} parent=27 // pred_check_branch
          %152 = sbr.rel (%p150) target = $region32
        $region31: #{tpu_custom_call.1} parent=27 // pred_region
          %153 = dma.done %s146, 128
        $region32: #{tpu_custom_call.1} parent=27 // pred_fallthru
          _
        // Predicated region
        $region33: #{tpu_custom_call.1} parent=27 // pred_check
          %p154 = pneg %p62
        $region34: #{tpu_custom_call.1} parent=27 // pred_check_branch
          %156 = sbr.rel (%p154) target = $region36
        $region35: #{tpu_custom_call.1} parent=27 // pred_region
          %157 = dma.done [#allocation7], 256
        $region36: #{tpu_custom_call.1} parent=27 // pred_fallthru
          _
        %s158 = sand.u32 %s28, 1
        %s159 = scalar_lea.sflag [#allocation4], %s158
        %s160 = sand.u32 %s28, 1
        %s161 = smul.addr %s160, 8
        %s162 = scalar_lea.vmem [#allocation3], %s161
        %p163 = pneg %p41
        %p164 = pneg %p38
        %p165 = pneg %p62
        %p166 = pneg %p59
        %p167 = pneg %p88
        %p168 = pneg %p85
        %s169 = sand.u32 %s75, 1
        %s170 = scalar_lea.sflag [#allocation5], %s169
        %s171 = sand.u32 %s75, 1
        %s172 = smul.addr %s171, 64
        %s173 = scalar_lea.vmem [#allocation8], %s172
        %v174 = vld [vmem:[%s149] sm:$0xff]
        %v175 = vld [vmem:[#allocation6] sm:$0x1]
        %v176 = vlaneseq
        %v177 = vshrl.u32 %v176, 7
        %v178 = vsub.s32 0, %v177
        %v179 = vrot.slane %v175, %v178
        %v180 = vadd.f32 %v174, %v179
        %vm181 = vcmask 261120
        %182 = vst.msk [vmem:[#allocation2] sm:$0xff] %vm181, %v180
        %v183 = vld [vmem:[#allocation6 + $0x1] sm:$0x1]
        %v184 = vlaneseq
        %v185 = vshrl.u32 %v184, 7
        %v186 = vsub.s32 0, %v185
        %v187 = vrot.slane %v183, %v186
        %v188 = vadd.f32 %v174, %v187
        %190 = vrot.lane.b32.xlu0 %v188, 32
        %v191 = vpop.permute.xlu0 %190
        %vm193 = vcmask 523520
        %194 = vst.msk [vmem:[#allocation2] sm:$0xff] %vm193, %v191
        %v195 = vld [vmem:[#allocation6 + $0x2] sm:$0x1]
        %v196 = vlaneseq
        %v197 = vshrl.u32 %v196, 7
        %v198 = vsub.s32 0, %v197
        %v199 = vrot.slane %v195, %v198
        %v200 = vadd.f32 %v174, %v199
        %202 = vrot.lane.b32.xlu0 %v200, 64
        %v203 = vpop.permute.xlu0 %202
        %vm205 = vcmask 785920
        %206 = vst.msk [vmem:[#allocation2] sm:$0xff] %vm205, %v203
        %v207 = vld [vmem:[#allocation6 + $0x3] sm:$0x1]
        %v208 = vlaneseq
        %v209 = vshrl.u32 %v208, 7
        %v210 = vsub.s32 0, %v209
        %v211 = vrot.slane %v207, %v210
        %v212 = vadd.f32 %v174, %v211
        %214 = vrot.lane.b32.xlu0 %v212, 96
        %v215 = vpop.permute.xlu0 %214
        %vm217 = vcmask 1048320
        %218 = vst.msk [vmem:[#allocation2] sm:$0xff] %vm217, %v215
        %v219 = vld [vmem:[#allocation6 + $0x4] sm:$0x1]
        %v220 = vlaneseq
        %v221 = vshrl.u32 %v220, 7
        %v222 = vsub.s32 0, %v221
        %v223 = vrot.slane %v219, %v222
        %v224 = vadd.f32 %v174, %v223
        %225 = vst.msk [vmem:[#allocation2 + $0x8] sm:$0xff] %vm181, %v224
        %v226 = vld [vmem:[#allocation6 + $0x5] sm:$0x1]
        %v227 = vlaneseq
        %v228 = vshrl.u32 %v227, 7
        %v229 = vsub.s32 0, %v228
        %v230 = vrot.slane %v226, %v229
        %v231 = vadd.f32 %v174, %v230
        %233 = vrot.lane.b32.xlu0 %v231, 32
        %v234 = vpop.permute.xlu0 %233
        %236 = vst.msk [vmem:[#allocation2 + $0x8] sm:$0xff] %vm193, %v234
        %v237 = vld [vmem:[#allocation6 + $0x6] sm:$0x1]
        %v238 = vlaneseq
        %v239 = vshrl.u32 %v238, 7
        %v240 = vsub.s32 0, %v239
        %v241 = vrot.slane %v237, %v240
        %v242 = vadd.f32 %v174, %v241
        %244 = vrot.lane.b32.xlu0 %v242, 64
        %v245 = vpop.permute.xlu0 %244
        %247 = vst.msk [vmem:[#allocation2 + $0x8] sm:$0xff] %vm205, %v245
        %v248 = vld [vmem:[#allocation6 + $0x7] sm:$0x1]
        %v249 = vlaneseq
        %v250 = vshrl.u32 %v249, 7
        %v251 = vsub.s32 0, %v250
        %v252 = vrot.slane %v248, %v251
        %v253 = vadd.f32 %v174, %v252
        %255 = vrot.lane.b32.xlu0 %v253, 96
        %v256 = vpop.permute.xlu0 %255
        %258 = vst.msk [vmem:[#allocation2 + $0x8] sm:$0xff] %vm217, %v256
        %v259 = vld [vmem:[#allocation6 + $0x8] sm:$0x1]
        %v260 = vlaneseq
        %v261 = vshrl.u32 %v260, 7
        %v262 = vsub.s32 0, %v261
        %v263 = vrot.slane %v259, %v262
        %v264 = vadd.f32 %v174, %v263
        %265 = vst.msk [vmem:[#allocation2 + $0x10] sm:$0xff] %vm181, %v264
        %v266 = vld [vmem:[#allocation6 + $0x9] sm:$0x1]
        %v267 = vlaneseq
        %v268 = vshrl.u32 %v267, 7
        %v269 = vsub.s32 0, %v268
        %v270 = vrot.slane %v266, %v269
        %v271 = vadd.f32 %v174, %v270
        %273 = vrot.lane.b32.xlu0 %v271, 32
        %v274 = vpop.permute.xlu0 %273
        %276 = vst.msk [vmem:[#allocation2 + $0x10] sm:$0xff] %vm193, %v274
        %v277 = vld [vmem:[#allocation6 + $0xa] sm:$0x1]
        %v278 = vlaneseq
        %v279 = vshrl.u32 %v278, 7
        %v280 = vsub.s32 0, %v279
        %v281 = vrot.slane %v277, %v280
        %v282 = vadd.f32 %v174, %v281
        %284 = vrot.lane.b32.xlu0 %v282, 64
        %v285 = vpop.permute.xlu0 %284
        %287 = vst.msk [vmem:[#allocation2 + $0x10] sm:$0xff] %vm205, %v285
        %v288 = vld [vmem:[#allocation6 + $0xb] sm:$0x1]
        %v289 = vlaneseq
        %v290 = vshrl.u32 %v289, 7
        %v291 = vsub.s32 0, %v290
        %v292 = vrot.slane %v288, %v291
        %v293 = vadd.f32 %v174, %v292
        %295 = vrot.lane.b32.xlu0 %v293, 96
        %v296 = vpop.permute.xlu0 %295
        %298 = vst.msk [vmem:[#allocation2 + $0x10] sm:$0xff] %vm217, %v296
        %v299 = vld [vmem:[#allocation6 + $0xc] sm:$0x1]
        %v300 = vlaneseq
        %v301 = vshrl.u32 %v300, 7
        %v302 = vsub.s32 0, %v301
        %v303 = vrot.slane %v299, %v302
        %v304 = vadd.f32 %v174, %v303
        %305 = vst.msk [vmem:[#allocation2 + $0x18] sm:$0xff] %vm181, %v304
        %v306 = vld [vmem:[#allocation6 + $0xd] sm:$0x1]
        %v307 = vlaneseq
        %v308 = vshrl.u32 %v307, 7
        %v309 = vsub.s32 0, %v308
        %v310 = vrot.slane %v306, %v309
        %v311 = vadd.f32 %v174, %v310
        %313 = vrot.lane.b32.xlu0 %v311, 32
        %v314 = vpop.permute.xlu0 %313
        %316 = vst.msk [vmem:[#allocation2 + $0x18] sm:$0xff] %vm193, %v314
        %v317 = vld [vmem:[#allocation6 + $0xe] sm:$0x1]
        %v318 = vlaneseq
        %v319 = vshrl.u32 %v318, 7
        %v320 = vsub.s32 0, %v319
        %v321 = vrot.slane %v317, %v320
        %v322 = vadd.f32 %v174, %v321
        %324 = vrot.lane.b32.xlu0 %v322, 64
        %v325 = vpop.permute.xlu0 %324
        %327 = vst.msk [vmem:[#allocation2 + $0x18] sm:$0xff] %vm205, %v325
        %v328 = vld [vmem:[#allocation6 + $0xf] sm:$0x1]
        %v329 = vlaneseq
        %v330 = vshrl.u32 %v329, 7
        %v331 = vsub.s32 0, %v330
        %v332 = vrot.slane %v328, %v331
        %v333 = vadd.f32 %v174, %v332
        %335 = vrot.lane.b32.xlu0 %v333, 96
        %v336 = vpop.permute.xlu0 %335
        %338 = vst.msk [vmem:[#allocation2 + $0x18] sm:$0xff] %vm217, %v336
        %v339 = vld [vmem:[#allocation2] sm:$0xff]
        %v340 = vld [vmem:[#allocation2 + $0x8] sm:$0xff]
        %v341 = vld [vmem:[#allocation2 + $0x10] sm:$0xff]
        %v342 = vld [vmem:[#allocation2 + $0x18] sm:$0xff]
        %343 = vst [vmem:[%s173] sm:$0xff] %v339
        %344 = vst [vmem:[%s173 + $0x8] sm:$0xff] %v340
        %345 = vst [vmem:[%s173 + $0x10] sm:$0xff] %v341
        %346 = vst [vmem:[%s173 + $0x18] sm:$0xff] %v342
        %v347 = vld [vmem:[#allocation2] sm:$0xff]
        %v348 = vld [vmem:[#allocation2 + $0x8] sm:$0xff]
        %v349 = vld [vmem:[#allocation2 + $0x10] sm:$0xff]
        %v350 = vld [vmem:[#allocation2 + $0x18] sm:$0xff]
        %s351 = scalar_lea.vmem %s173, 32 [#allocation8]
        %352 = vst [vmem:[%s351] sm:$0xff] %v347
        %353 = vst [vmem:[%s351 + $0x8] sm:$0xff] %v348
        %354 = vst [vmem:[%s351 + $0x10] sm:$0xff] %v349
        %355 = vst [vmem:[%s351 + $0x18] sm:$0xff] %v350
        %s356 = sand.u32 %s75, 1
        %s357 = scalar_lea.sflag [#allocation5], %s356
        %s358 = sand.u32 %s75, 1
        %s359 = smul.addr %s358, 64
        %s360 = scalar_lea.vmem [#allocation8], %s359
        // Predicated region
        $region37: #{tpu_custom_call.1} parent=27 // pred_check
          %p361 = pneg %p85
        $region38: #{tpu_custom_call.1} parent=27 // pred_check_branch
          %363 = sbr.rel (%p361) target = $region40
        $region39: #{tpu_custom_call.1} parent=27 // pred_region
          %s365 = ssub.s32 1024, 1024
          %366 = vsyncadd %s357, %s365
          %s367 = smul.addr %s20, 4
          %s368 = smul.addr %s367, 128
          %s369 = scalar_lea.hbm %s2, %s368
          %s370 = sshll.u32 %s360, 4
          %s371 = int_to_ptr.vmem [resolvable:$true] %s370
          %376 = dma.vmem_to_hbm [thread:$0]  %s371, 1024, %s369, %s357, 512, 1024, 32
        $region40: #{tpu_custom_call.1} parent=27 // pred_fallthru
          _
      $region28: #{tpu_custom_call.1} parent=5 // pred_fallthru
        _
      %p377 = scmp.le.s32.totalorder 2, %s15
      // Predicated region
      $region41: #{tpu_custom_call.1} parent=5 // pred_check
        %p378 = pneg %p377
      $region42: #{tpu_custom_call.1} parent=5 // pred_check_branch
        %380 = sbr.rel (%p378) target = $region44
      $region43: #{tpu_custom_call.1} parent=5 // pred_region
        %s381 = ssub.s32 %s15, 2
        // Predicated region
        $region45: #{tpu_custom_call.1} parent=43 // pred_check
          %p382 = pneg %p91
        $region46: #{tpu_custom_call.1} parent=43 // pred_check_branch
          %384 = sbr.rel (%p382) target = $region48
        $region47: #{tpu_custom_call.1} parent=43 // pred_region
          %s385 = sand.u32 %s76, 1
          %s386 = scalar_lea.sflag [#allocation5], %s385
          %s387 = sand.u32 %s76, 1
          %s388 = smul.addr %s387, 64
          %s389 = scalar_lea.vmem [#allocation8], %s388
          %390 = dma.done %s386, 1024
        $region48: #{tpu_custom_call.1} parent=43 // pred_fallthru
          _
      $region44: #{tpu_custom_call.1} parent=5 // pred_fallthru
        _
    $region6: #{tpu_custom_call.1} parent=1 // loop_footer
      %s19 = sadd.s32 1, %s15
    $region7: #{tpu_custom_call.1} parent=1 // loop_footer_branch
      %14 = sbr.rel target = $region3
    $region8: #{tpu_custom_call.1} parent=1 // loop_exit
      _
    %391 = vsyncpa [#allocation4], 1
    %s392 = scalar_lea.sflag [#allocation4], 1
    %393 = vsyncpa %s392, 1
    %394 = vsyncpa [#allocation7], 1
    %395 = vsyncpa [#allocation5], 1
    %s396 = scalar_lea.sflag [#allocation5], 1
    %397 = vsyncpa %s396, 1

</llo_original>
